<compile_context>
chip_gen: v7x
topology: tpu7x:2x2x1
jax: 0.10.0
libtpu: 0.0.40
codegen_flags: <defaults>
</compile_context>

<pallas_src>
import functools

import jax
import jax.numpy as jnp
from jax import lax
from jax.experimental import pallas as pl
from jax.experimental.pallas import tpu as pltpu


def _msa_kernel(target_ref, ctx_ref, w_ref, wc_ref, attn_ref, *,
                num_head, idf, compute_dtype):
    """One (batch b, q-tile) block; all heads fused inside.

    target_ref : (1, idf, TILE_Q)      input in NC(HW) layout, f32
    ctx_ref    : (1, cdf, sourceL)     context, f32
    w_ref      : (num_head*idf, cdf)   stacked 1x1-conv weights, f32
    wc_ref     : (1, idf, TILE_Q)      sum over heads of weightedContext
    attn_ref   : (1, sourceL, TILE_Q)  sum over heads of softmax(attn)^T
    """
    tgt = target_ref[0].astype(compute_dtype)      # (idf, TILE_Q)
    ctx = ctx_ref[0].astype(compute_dtype)         # (cdf, sourceL)
    w_all = w_ref[...].astype(compute_dtype)       # (H*idf, cdf)

    # All heads' 1x1 convs as ONE MXU matmul: (H*idf, cdf) @ (cdf, sourceL).
    srcT_all = lax.dot_general(
        w_all, ctx, (((1,), (0,)), ((), ())),
        preferred_element_type=jnp.float32)        # (H*idf, sourceL), f32
    # Cast once (outside the head loop) for the downstream MXU contractions.
    srcT_all_c = srcT_all.astype(compute_dtype)    # (H*idf, sourceL)

    wc_acc = jnp.zeros(wc_ref.shape[1:], jnp.float32)      # (idf, TILE_Q)
    attn_acc = jnp.zeros(attn_ref.shape[1:], jnp.float32)  # (sourceL, TILE_Q)

    for h in range(num_head):                      # small, statically unrolled
        srcT = srcT_all_c[h * idf:(h + 1) * idf, :]         # (idf, sourceL)

        # scores[s, q] = sum_i srcT[i, s] * tgt[i, q]   (contract idf; TN form,
        # no materialized transpose).
        scores = lax.dot_general(
            srcT, tgt, (((0,), (0,)), ((), ())),
            preferred_element_type=jnp.float32)    # (sourceL, TILE_Q), f32

        # softmax over sourceL (matches nn.Softmax on (B*queryL, sourceL)).
        m = jnp.max(scores, axis=0, keepdims=True)
        p = jnp.exp(scores - m)
        denom = jnp.sum(p, axis=0, keepdims=True)
        attn_sm = p * pl.reciprocal(denom, approx=True)    # (sourceL, TILE_Q), f32

        # weightedContext already in its final (idf, queryL) layout:
        #   (idf, sourceL) @ (sourceL, TILE_Q)   -- plain NN matmul.
        wc = lax.dot_general(
            srcT, attn_sm.astype(compute_dtype), (((1,), (0,)), ((), ())),
            preferred_element_type=jnp.float32)    # (idf, TILE_Q), f32

        wc_acc = wc_acc + wc
        attn_acc = attn_acc + attn_sm

    # Single lane-dense store per output (last dim = TILE_Q, multiple of 128
    # or the full queryL extent).
    wc_ref[0] = wc_acc.astype(wc_ref.dtype)
    attn_ref[0] = attn_acc.astype(attn_ref.dtype)


def _pick_tile_q(queryL, cap=512):
    """Largest lane-dense (multiple-of-128) q tile <= cap that divides queryL."""
    if queryL <= cap:
        return queryL
    t = (cap // 128) * 128
    while t >= 128:
        if queryL % t == 0:
            return t
        t -= 128
    return queryL  # fallback: single full block (correctness preserved)


def _vmem_limit_bytes(idf, cdf, sourceL, tile_q, num_head):
    f32 = 4
    io_block = f32 * (idf * tile_q            # target block
                      + cdf * sourceL         # context block
                      + num_head * idf * cdf  # weights
                      + idf * tile_q          # wc out block
                      + sourceL * tile_q)     # attn out block
    interm = f32 * (2 * num_head * idf * sourceL  # srcT_all (f32 + cast copy)
                    + 4 * sourceL * tile_q        # scores / p / attn_sm / attn_acc
                    + 2 * idf * tile_q)           # wc / wc_acc
    est = 2 * io_block + 2 * interm + (4 << 20)   # double-buffered IO + headroom
    # Stay within the v7x per-core physical VMEM (64 MiB) with margin.
    return int(min(max(est, 32 << 20), 56 << 20))


def multi_spatial_attention(inp, context, weights, *,
                            compute_dtype=jnp.bfloat16, tile_q=None):
    """Pallas implementation of MultiSpatialAttention.forward (mask=None).

    inp     : (B, idf, ih, iw)      float32 (NCHW, as PyTorch)
    context : (B, cdf, sourceL)     float32
    weights : (num_head, idf, cdf)  float32 (1x1 conv weights squeezed)

    Returns:
      weightedContextOut : (B, idf, queryL)
      attnOut            : (B, sourceL, ih, iw)
    """
    B, idf, ih, iw = inp.shape
    _, cdf, sourceL = context.shape
    num_head = weights.shape[0]
    queryL = ih * iw

    # Free reshapes only -- no wrapper transposes.
    target = inp.reshape(B, idf, queryL)                 # (B, idf, queryL)
    w_flat = weights.reshape(num_head * idf, cdf)        # (H*idf, cdf)

    if tile_q is None:
        tile_q = _pick_tile_q(queryL)
    assert queryL % tile_q == 0
    n_q = queryL // tile_q

    kernel = functools.partial(_msa_kernel, num_head=num_head, idf=idf,
                               compute_dtype=compute_dtype)

    wc_out, attnT_out = pl.pallas_call(
        kernel,
        out_shape=(
            jax.ShapeDtypeStruct((B, idf, queryL), jnp.float32),
            jax.ShapeDtypeStruct((B, sourceL, queryL), jnp.float32),
        ),
        grid_spec=pltpu.PrefetchScalarGridSpec(
            num_scalar_prefetch=0,
            grid=(B, n_q),
            in_specs=[
                pl.BlockSpec((1, idf, tile_q), lambda b, q: (b, 0, q)),
                pl.BlockSpec((1, cdf, sourceL), lambda b, q: (b, 0, 0)),
                pl.BlockSpec((num_head * idf, cdf), lambda b, q: (0, 0)),
            ],
            out_specs=[
                pl.BlockSpec((1, idf, tile_q), lambda b, q: (b, 0, q)),
                pl.BlockSpec((1, sourceL, tile_q), lambda b, q: (b, 0, q)),
            ],
        ),
        compiler_params=pltpu.CompilerParams(
            dimension_semantics=("parallel", "parallel"),
            vmem_limit_bytes=_vmem_limit_bytes(idf, cdf, sourceL, tile_q, num_head),
        ),
    )(target, context, w_flat)

    weightedContextOut = wc_out                              # already (B, idf, queryL)
    attnOut = attnT_out.reshape(B, sourceL, ih, iw)          # reshape only, no transpose
    return weightedContextOut, attnOut


def _reference(inp, context, weights):
    """Pure-JAX reference mirroring the PyTorch forward (mask=None), f32."""
    B, idf, ih, iw = inp.shape
    _, cdf, sourceL = context.shape
    queryL = ih * iw
    target = inp.reshape(B, idf, queryL)
    targetT = jnp.transpose(target, (0, 2, 1))
    wc_acc = None
    attn_acc = None
    for i in range(weights.shape[0]):
        sourceT = jnp.einsum("oc,bcs->bos", weights[i], context)   # (B, idf, sourceL)
        attn = jnp.einsum("bqi,bis->bqs", targetT, sourceT)        # (B, queryL, sourceL)
        attn = jax.nn.softmax(attn, axis=-1)
        attn_t = jnp.transpose(attn, (0, 2, 1))                    # (B, sourceL, queryL)
        wc = jnp.einsum("bis,bsq->biq", sourceT, attn_t)           # (B, idf, queryL)
        a = attn_t.reshape(B, sourceL, ih, iw)
        wc_acc = wc if wc_acc is None else wc_acc + wc
        attn_acc = a if attn_acc is None else attn_acc + a
    return wc_acc, attn_acc


if __name__ == "__main__":
    # Small, module-consistent shapes (queryL = 256 keeps outputs lane-dense).
    B, idf, cdf, num_head = 2, 32, 16, 2
    ih = iw = 16          # queryL = 256
    sourceL = 32

    key = jax.random.PRNGKey(0)
    k_inp, k_ctx, k_w = jax.random.split(key, 3)
    inp = jax.random.normal(k_inp, (B, idf, ih, iw), dtype=jnp.float32)
    context = jax.random.normal(k_ctx, (B, cdf, sourceL), dtype=jnp.float32)
    weights = 0.1 * jax.random.normal(k_w, (num_head, idf, cdf), dtype=jnp.float32)

    wc_ref, attn_ref = _reference(inp, context, weights)

    # 1) f32 matmul path -- tight numerical check (approx reciprocal only).
    wc32, attn32 = multi_spatial_attention(inp, context, weights,
                                           compute_dtype=jnp.float32)
    jax.block_until_ready((wc32, attn32))
    assert wc32.shape == (B, idf, ih * iw)
    assert attn32.shape == (B, sourceL, ih, iw)
    assert jnp.allclose(wc32, wc_ref, rtol=5e-3, atol=5e-3)
    assert jnp.allclose(attn32, attn_ref, rtol=5e-3, atol=5e-3)

    # 2) default bf16 matmul path (f32 softmax/accumulation) -- looser check.
    wc_bf, attn_bf = multi_spatial_attention(inp, context, weights)
    jax.block_until_ready((wc_bf, attn_bf))
    assert wc_bf.shape == (B, idf, ih * iw)
    assert attn_bf.shape == (B, sourceL, ih, iw)
    assert jnp.allclose(wc_bf, wc_ref, rtol=1e-1, atol=1e-1)
    assert jnp.allclose(attn_bf, attn_ref, rtol=1e-1, atol=1e-1)

    print("KERNEL_OK")
</pallas_src>

<mosaic_0001>
module attributes {stable_mosaic.version = 11 : i64} {
  func.func @_msa_kernel(%arg0: i32, %arg1: i32, %arg2: memref<1x32x256xf32, #tpu.memory_space<vmem>>, %arg3: memref<1x16x32xf32, #tpu.memory_space<vmem>>, %arg4: memref<64x16xf32, #tpu.memory_space<vmem>>, %arg5: memref<1x32x256xf32, #tpu.memory_space<vmem>>, %arg6: memref<1x32x256xf32, #tpu.memory_space<vmem>>) attributes {dimension_semantics = [#tpu.dimension_semantics<parallel>, #tpu.dimension_semantics<parallel>], iteration_bounds = array<i64: 2, 1>, scalar_prefetch = 0 : i64, scratch_operands = 0 : i64, tpu.core_type = #tpu.core_type<tc>, window_params = [{transform_indices = @transform_0, window_bounds = array<i64: 1, 32, 256>}, {transform_indices = @transform_1, window_bounds = array<i64: 1, 16, 32>}, {pipeline_mode = #tpu.pipeline_mode<synchronous>, transform_indices = @transform_2, window_bounds = array<i64: 64, 16>}, {transform_indices = @transform_3, window_bounds = array<i64: 1, 32, 256>}, {transform_indices = @transform_4, window_bounds = array<i64: 1, 32, 256>}]} {
    %c0 = arith.constant 0 : index
    %c0_0 = arith.constant 0 : index
    %c0_1 = arith.constant 0 : index
    %0 = vector.load %arg2[%c0, %c0_0, %c0_1] : memref<1x32x256xf32, #tpu.memory_space<vmem>>, vector<1x32x256xf32>
    %1 = vector.shape_cast %0 : vector<1x32x256xf32> to vector<32x256xf32>
    %c0_2 = arith.constant 0 : index
    %c0_3 = arith.constant 0 : index
    %c0_4 = arith.constant 0 : index
    %2 = vector.load %arg3[%c0_2, %c0_3, %c0_4] : memref<1x16x32xf32, #tpu.memory_space<vmem>>, vector<1x16x32xf32>
    %3 = vector.shape_cast %2 : vector<1x16x32xf32> to vector<16x32xf32>
    %c0_5 = arith.constant 0 : index
    %c0_6 = arith.constant 0 : index
    %4 = vector.load %arg4[%c0_5, %c0_6] : memref<64x16xf32, #tpu.memory_space<vmem>>, vector<64x16xf32>
    %cst = arith.constant dense<0.000000e+00> : vector<64x32xf32>
    %5 = tpu.matmul %4, %3, %cst {dimension_numbers = #tpu.dot_dimension_numbers<[1], [0], [0], [1], [0, 0, 1, 1], [], []>} : vector<64x16xf32>, vector<16x32xf32>, vector<64x32xf32> -> vector<64x32xf32>
    %cst_7 = arith.constant 0.000000e+00 : f32
    %6 = vector.broadcast %cst_7 : f32 to vector<32x256xf32>
    %cst_8 = arith.constant 0.000000e+00 : f32
    %7 = vector.broadcast %cst_8 : f32 to vector<32x256xf32>
    %8 = vector.extract_strided_slice %5 {offsets = [0, 0], sizes = [32, 32], strides = [1, 1]} : vector<64x32xf32> to vector<32x32xf32>
    %cst_9 = arith.constant dense<0.000000e+00> : vector<32x256xf32>
    %9 = tpu.matmul %8, %1, %cst_9 {dimension_numbers = #tpu.dot_dimension_numbers<[0], [0], [1], [1], [0, 1, 1, 1], [], []>} : vector<32x32xf32>, vector<32x256xf32>, vector<32x256xf32> -> vector<32x256xf32>
    %cst_10 = arith.constant dense<0xFF800000> : vector<256xf32>
    %10 = vector.multi_reduction <maximumf>, %9, %cst_10 [0] : vector<32x256xf32> to vector<256xf32>
    %11 = vector.shape_cast %10 : vector<256xf32> to vector<1x256xf32>
    %12 = vector.broadcast %11 : vector<1x256xf32> to vector<32x256xf32>
    %13 = arith.subf %9, %12 : vector<32x256xf32>
    %14 = math.exp %13 : vector<32x256xf32>
    %cst_11 = arith.constant dense<0.000000e+00> : vector<256xf32>
    %15 = vector.multi_reduction <add>, %14, %cst_11 [0] : vector<32x256xf32> to vector<256xf32>
    %16 = vector.shape_cast %15 : vector<256xf32> to vector<1x256xf32>
    %17 = tpu.reciprocal %16 {approx = true} : vector<1x256xf32> -> vector<1x256xf32>
    %18 = vector.broadcast %17 : vector<1x256xf32> to vector<32x256xf32>
    %19 = arith.mulf %14, %18 : vector<32x256xf32>
    %cst_12 = arith.constant dense<0.000000e+00> : vector<32x256xf32>
    %20 = tpu.matmul %8, %19, %cst_12 {dimension_numbers = #tpu.dot_dimension_numbers<[1], [0], [0], [1], [0, 0, 1, 1], [], []>} : vector<32x32xf32>, vector<32x256xf32>, vector<32x256xf32> -> vector<32x256xf32>
    %21 = arith.addf %6, %20 : vector<32x256xf32>
    %22 = arith.addf %7, %19 : vector<32x256xf32>
    %23 = vector.extract_strided_slice %5 {offsets = [32, 0], sizes = [32, 32], strides = [1, 1]} : vector<64x32xf32> to vector<32x32xf32>
    %cst_13 = arith.constant dense<0.000000e+00> : vector<32x256xf32>
    %24 = tpu.matmul %23, %1, %cst_13 {dimension_numbers = #tpu.dot_dimension_numbers<[0], [0], [1], [1], [0, 1, 1, 1], [], []>} : vector<32x32xf32>, vector<32x256xf32>, vector<32x256xf32> -> vector<32x256xf32>
    %cst_14 = arith.constant dense<0xFF800000> : vector<256xf32>
    %25 = vector.multi_reduction <maximumf>, %24, %cst_14 [0] : vector<32x256xf32> to vector<256xf32>
    %26 = vector.shape_cast %25 : vector<256xf32> to vector<1x256xf32>
    %27 = vector.broadcast %26 : vector<1x256xf32> to vector<32x256xf32>
    %28 = arith.subf %24, %27 : vector<32x256xf32>
    %29 = math.exp %28 : vector<32x256xf32>
    %cst_15 = arith.constant dense<0.000000e+00> : vector<256xf32>
    %30 = vector.multi_reduction <add>, %29, %cst_15 [0] : vector<32x256xf32> to vector<256xf32>
    %31 = vector.shape_cast %30 : vector<256xf32> to vector<1x256xf32>
    %32 = tpu.reciprocal %31 {approx = true} : vector<1x256xf32> -> vector<1x256xf32>
    %33 = vector.broadcast %32 : vector<1x256xf32> to vector<32x256xf32>
    %34 = arith.mulf %29, %33 : vector<32x256xf32>
    %cst_16 = arith.constant dense<0.000000e+00> : vector<32x256xf32>
    %35 = tpu.matmul %23, %34, %cst_16 {dimension_numbers = #tpu.dot_dimension_numbers<[1], [0], [0], [1], [0, 0, 1, 1], [], []>} : vector<32x32xf32>, vector<32x256xf32>, vector<32x256xf32> -> vector<32x256xf32>
    %36 = arith.addf %21, %35 : vector<32x256xf32>
    %37 = arith.addf %22, %34 : vector<32x256xf32>
    %c0_17 = arith.constant 0 : index
    %c0_18 = arith.constant 0 : index
    %c0_19 = arith.constant 0 : index
    %38 = vector.load %arg5[%c0_17, %c0_18, %c0_19] : memref<1x32x256xf32, #tpu.memory_space<vmem>>, vector<1x32x256xf32>
    %39 = vector.shape_cast %38 : vector<1x32x256xf32> to vector<32x256xf32>
    %40 = vector.shape_cast %36 : vector<32x256xf32> to vector<1x32x256xf32>
    tpu.vector_store %arg5[%c0_17, %c0_18, %c0_19], %40 {strides = array<i32>} : memref<1x32x256xf32, #tpu.memory_space<vmem>>, vector<1x32x256xf32>,
    %c0_20 = arith.constant 0 : index
    %c0_21 = arith.constant 0 : index
    %c0_22 = arith.constant 0 : index
    %41 = vector.load %arg6[%c0_20, %c0_21, %c0_22] : memref<1x32x256xf32, #tpu.memory_space<vmem>>, vector<1x32x256xf32>
    %42 = vector.shape_cast %41 : vector<1x32x256xf32> to vector<32x256xf32>
    %43 = vector.shape_cast %37 : vector<32x256xf32> to vector<1x32x256xf32>
    tpu.vector_store %arg6[%c0_20, %c0_21, %c0_22], %43 {strides = array<i32>} : memref<1x32x256xf32, #tpu.memory_space<vmem>>, vector<1x32x256xf32>,
    return
  }
  func.func @transform_0(%arg0: i32, %arg1: i32) -> (i32, i32, i32) {
    %c0_i32 = arith.constant 0 : i32
    %c0_i32_0 = arith.constant 0 : i32
    return %arg0, %c0_i32, %arg1 : i32, i32, i32
  }
  func.func @transform_1(%arg0: i32, %arg1: i32) -> (i32, i32, i32) {
    %c0_i32 = arith.constant 0 : i32
    %c0_i32_0 = arith.constant 0 : i32
    %c0_i32_1 = arith.constant 0 : i32
    return %arg0, %c0_i32, %c0_i32_0 : i32, i32, i32
  }
  func.func @transform_2(%arg0: i32, %arg1: i32) -> (i32, i32) {
    %c0_i32 = arith.constant 0 : i32
    %c0_i32_0 = arith.constant 0 : i32
    %c0_i32_1 = arith.constant 0 : i32
    return %c0_i32, %c0_i32_0 : i32, i32
  }
  func.func @transform_3(%arg0: i32, %arg1: i32) -> (i32, i32, i32) {
    %c0_i32 = arith.constant 0 : i32
    %c0_i32_0 = arith.constant 0 : i32
    return %arg0, %c0_i32, %arg1 : i32, i32, i32
  }
  func.func @transform_4(%arg0: i32, %arg1: i32) -> (i32, i32, i32) {
    %c0_i32 = arith.constant 0 : i32
    %c0_i32_0 = arith.constant 0 : i32
    return %arg0, %c0_i32, %arg1 : i32, i32, i32
  }
}

</mosaic_0001>

<llo_original>
// kernel: tpu_custom_call.1
$region0: #{tpu_custom_call.1}
  #allocation0 [shape = 'u32[]', space=smem, size = 0x4, offset = 0x4, fixed_abs, tag = 'smem constant byte address 0x4 - core index']
  #allocation1 [shape = 'u32[144,128]{1,0:T(1,128)}', space=vmem, size = 0x12000, scoped, tag = 'internal scratch']
  %s0 = inlined_call_operand.hbm [shape: f32[2,32,256], index: 0, kind: input, shape index: {}]
  %s1 = inlined_call_operand.vmem [shape: f32[2,16,32], index: 1, kind: input, shape index: {}]
  %s2 = inlined_call_operand.vmem [shape: f32[64,16], index: 2, kind: input, shape index: {}]
  %s3 = inlined_call_operand.hbm [shape: f32[2,32,256], index: 3, kind: output, shape index: {0}]
  %s4 = inlined_call_operand.hbm [shape: f32[2,32,256], index: 4, kind: output, shape index: {1}]
  %5 = xla_tuple %s3, %s4
  %s6 = sld [smem:[#allocation0]]
  $region57: #{tpu_custom_call.1} parent=0
    _
  %s8 = ssub.s32 1, %s6
  %s9 = scalar_select 0, %s8, %s6
  $region1: #{tpu_custom_call.1} parent=0
    #allocation2 [shape = 'u8[65536]{0}', space=vmem, size = 0x10000, scoped, tag = 'input window, operand 0']
    #allocation3 [shape = 's32[2]{0}', space=sflag, size = 0x8, scoped, tag = 'scoped memory for tpu_custom_call.1']
    #allocation4 [shape = 's32[2]{0}', space=sflag, size = 0x8, scoped, tag = 'scoped memory for tpu_custom_call.1']
    #allocation5 [shape = 'u8[65536]{0}', space=vmem, size = 0x10000, scoped, tag = 'output window, operand 0']
    #allocation6 [shape = 'u8[65536]{0}', space=vmem, size = 0x10000, scoped, tag = 'output window, operand 1']
    #allocation7 [shape = 's32[2]{0}', space=sflag, size = 0x8, scoped, tag = 'scoped memory for tpu_custom_call.1']
    %10 = vsyncpa [#allocation3], 0
    %s11 = scalar_lea.sflag [#allocation3], 1
    %12 = vsyncpa %s11, 0
    %13 = vsyncpa [#allocation4], 0
    %s14 = scalar_lea.sflag [#allocation4], 1
    %15 = vsyncpa %s14, 0
    %16 = vsyncpa [#allocation7], 0
    %s17 = scalar_lea.sflag [#allocation7], 1
    %18 = vsyncpa %s17, 0
    loop: start=0, step=1, limit=4
    $region2: #{tpu_custom_call.1} parent=1 // loop_pre_header
      _
    $region3: #{tpu_custom_call.1} parent=1 // loop_header
      %s20 = sphi 0, %s24
      %p21 = scmp.ge.s32.totalorder %s20, 4
      %s27 = sphi 0, %s39
      %s28 = sphi 0, %s35
      %s29 = sphi 0, %s27
      %s30 = sphi 0, %s28
      %s31 = sphi 0, %s29
      %s32 = sphi 0, %s30
      %s44 = sphi 0, %s46
      %s47 = sphi 0, %s44
      %s48 = sphi 0, %s47
      %s64 = sphi 0, %s48
      %s70 = sphi 0, %s72
      %s73 = sphi 0, %s70
      %s74 = sphi 0, %s73
      %s90 = sphi 0, %s74
      %s94 = sphi 0, %s94
      %s96 = sphi 0, %s94
      %s97 = sphi 0, %s96
      %s111 = sphi 0, %s97
      %s119 = sphi 0, %s121
      %s122 = sphi 0, %s119
      %s123 = sphi 0, %s122
      %s139 = sphi 0, %s123
      %s147 = sphi 0, %s149
      %s150 = sphi 0, %s147
      %s151 = sphi 0, %s150
      %s167 = sphi 0, %s151
    $region4: #{tpu_custom_call.1} parent=1 // loop_header_branch
      %23 = sbr.rel (%p21) target = $region8
    $region5: #{tpu_custom_call.1} parent=1 // loop_body
      %s25 = ssub.s32 %s20, 1
      %s26 = ssub.s32 %s20, 2
      %s33 = sadd.s32 1, %s28
      %p34 = scmp.ge.s32.totalorder %s33, 1
      %s35 = scalar_select %p34, 0, %s33
      %s36 = sadd.s32 1, %s27
      %s37 = scalar_select %p34, %s36, %s27
      %p38 = scmp.ge.s32.totalorder %s37, 2
      %s39 = scalar_select %p38, 0, %s37
      %s40 = ssub.s32 %s27, %s39
      %s41 = ssub.s32 %s28, %s35
      %s42 = sor.u32 %s40, %s41
      %p43 = scmp.eq.s32.totalorder %s42, 0
      %s45 = sadd.s32 %s44, 1
      %s46 = scalar_select %p43, %s44, %s45
      %p49 = pneg %p43
      %p50 = scmp.eq.s32.totalorder %s20, 1
      %p51 = por %p49, %p50
      %p52 = scmp.ne.s32.totalorder %s44, %s47
      %p53 = scmp.eq.s32.totalorder %s20, 0
      %p54 = por %p52, %p53
      %p55 = scmp.ne.s32.totalorder %s44, %s47
      %p56 = scmp.eq.s32.totalorder %s25, 1
      %p57 = por %p55, %p56
      %p58 = scmp.ne.s32.totalorder %s47, %s48
      %p59 = scmp.eq.s32.totalorder %s25, 0
      %p60 = por %p58, %p59
      %p61 = scmp.ne.s32.totalorder %s47, %s48
      %p62 = scmp.eq.s32.totalorder %s26, 1
      %p63 = por %p61, %p62
      %p65 = scmp.ne.s32.totalorder %s48, %s64
      %p66 = scmp.eq.s32.totalorder %s26, 0
      %p67 = por %p65, %p66
      %s68 = ssub.s32 %s27, %s39
      %p69 = scmp.eq.s32.totalorder %s68, 0
      %s71 = sadd.s32 %s70, 1
      %s72 = scalar_select %p69, %s70, %s71
      %p75 = pneg %p69
      %p76 = scmp.eq.s32.totalorder %s20, 1
      %p77 = por %p75, %p76
      %p78 = scmp.ne.s32.totalorder %s70, %s73
      %p79 = scmp.eq.s32.totalorder %s20, 0
      %p80 = por %p78, %p79
      %p81 = scmp.ne.s32.totalorder %s70, %s73
      %p82 = scmp.eq.s32.totalorder %s25, 1
      %p83 = por %p81, %p82
      %p84 = scmp.ne.s32.totalorder %s73, %s74
      %p85 = scmp.eq.s32.totalorder %s25, 0
      %p86 = por %p84, %p85
      %p87 = scmp.ne.s32.totalorder %s73, %s74
      %p88 = scmp.eq.s32.totalorder %s26, 1
      %p89 = por %p87, %p88
      %p91 = scmp.ne.s32.totalorder %s74, %s90
      %p92 = scmp.eq.s32.totalorder %s26, 0
      %p93 = por %p91, %p92
      %s95 = sadd.s32 %s94, 1
      %p98 = scmp.eq.s32.totalorder %s20, 1
      %p99 = scmp.ne.s32.totalorder %s94, %s96
      %p100 = scmp.eq.s32.totalorder %s20, 0
      %p101 = por %p99, %p100
      %p102 = scmp.ne.s32.totalorder %s94, %s96
      %p103 = scmp.eq.s32.totalorder %s25, 1
      %p104 = por %p102, %p103
      %p105 = scmp.ne.s32.totalorder %s96, %s97
      %p106 = scmp.eq.s32.totalorder %s25, 0
      %p107 = por %p105, %p106
      %p108 = scmp.ne.s32.totalorder %s96, %s97
      %p109 = scmp.eq.s32.totalorder %s26, 1
      %p110 = por %p108, %p109
      %p112 = scmp.ne.s32.totalorder %s97, %s111
      %p113 = scmp.eq.s32.totalorder %s26, 0
      %p114 = por %p112, %p113
      %s115 = ssub.s32 %s27, %s39
      %s116 = ssub.s32 %s28, %s35
      %s117 = sor.u32 %s115, %s116
      %p118 = scmp.eq.s32.totalorder %s117, 0
      %s120 = sadd.s32 %s119, 1
      %s121 = scalar_select %p118, %s119, %s120
      %p124 = pneg %p118
      %p125 = scmp.eq.s32.totalorder %s20, 1
      %p126 = por %p124, %p125
      %p127 = scmp.ne.s32.totalorder %s119, %s122
      %p128 = scmp.eq.s32.totalorder %s20, 0
      %p129 = por %p127, %p128
      %p130 = scmp.ne.s32.totalorder %s119, %s122
      %p131 = scmp.eq.s32.totalorder %s25, 1
      %p132 = por %p130, %p131
      %p133 = scmp.ne.s32.totalorder %s122, %s123
      %p134 = scmp.eq.s32.totalorder %s25, 0
      %p135 = por %p133, %p134
      %p136 = scmp.ne.s32.totalorder %s122, %s123
      %p137 = scmp.eq.s32.totalorder %s26, 1
      %p138 = por %p136, %p137
      %p140 = scmp.ne.s32.totalorder %s123, %s139
      %p141 = scmp.eq.s32.totalorder %s26, 0
      %p142 = por %p140, %p141
      %s143 = ssub.s32 %s27, %s39
      %s144 = ssub.s32 %s28, %s35
      %s145 = sor.u32 %s143, %s144
      %p146 = scmp.eq.s32.totalorder %s145, 0
      %s148 = sadd.s32 %s147, 1
      %s149 = scalar_select %p146, %s147, %s148
      %p152 = pneg %p146
      %p153 = scmp.eq.s32.totalorder %s20, 1
      %p154 = por %p152, %p153
      %p155 = scmp.ne.s32.totalorder %s147, %s150
      %p156 = scmp.eq.s32.totalorder %s20, 0
      %p157 = por %p155, %p156
      %p158 = scmp.ne.s32.totalorder %s147, %s150
      %p159 = scmp.eq.s32.totalorder %s25, 1
      %p160 = por %p158, %p159
      %p161 = scmp.ne.s32.totalorder %s150, %s151
      %p162 = scmp.eq.s32.totalorder %s25, 0
      %p163 = por %p161, %p162
      %p164 = scmp.ne.s32.totalorder %s150, %s151
      %p165 = scmp.eq.s32.totalorder %s26, 1
      %p166 = por %p164, %p165
      %p168 = scmp.ne.s32.totalorder %s151, %s167
      %p169 = scmp.eq.s32.totalorder %s26, 0
      %p170 = por %p168, %p169
      %p171 = scmp.le.s32.totalorder 1, %s20
      %p172 = scmp.lt.s32.totalorder %s20, 3
      %p173 = pnand %p171, %p172
      %p174 = pneg %p173
      // Predicated region
      $region9: #{tpu_custom_call.1} parent=5 // pred_check
        _
      $region10: #{tpu_custom_call.1} parent=5 // pred_check_branch
        %176 = sbr.rel (%p173) target = $region12
      $region11: #{tpu_custom_call.1} parent=5 // pred_region
        %s177 = ssub.s32 %s20, 1
        // Predicated region
        $region13: #{tpu_custom_call.1} parent=11 // pred_check
          %p178 = pneg %p107
        $region14: #{tpu_custom_call.1} parent=11 // pred_check_branch
          %180 = sbr.rel (%p178) target = $region16
        $region15: #{tpu_custom_call.1} parent=11 // pred_region
          _
        $region16: #{tpu_custom_call.1} parent=11 // pred_fallthru
          _
      $region12: #{tpu_custom_call.1} parent=5 // pred_fallthru
        _
      %p181 = scmp.lt.s32.totalorder %s20, 2
      // Predicated region
      $region17: #{tpu_custom_call.1} parent=5 // pred_check
        %p182 = pneg %p181
      $region18: #{tpu_custom_call.1} parent=5 // pred_check_branch
        %184 = sbr.rel (%p182) target = $region20
      $region19: #{tpu_custom_call.1} parent=5 // pred_region
        // Predicated region
        $region21: #{tpu_custom_call.1} parent=19 // pred_check
          %p185 = pneg %p54
        $region22: #{tpu_custom_call.1} parent=19 // pred_check_branch
          %187 = sbr.rel (%p185) target = $region24
        $region23: #{tpu_custom_call.1} parent=19 // pred_region
          %s188 = sand.u32 %s44, 1
          %s189 = scalar_lea.sflag [#allocation3], %s188
          %s190 = sand.u32 %s44, 1
          %s191 = smul.addr %s190, 64
          %s192 = scalar_lea.vmem [#allocation2], %s191
          %s193 = smul.u32 2, %s28
          %s195 = ssub.s32 1024, 1024
          %196 = vsyncadd %s189, %s195
          %s197 = smul.addr %s27, 8
          %s198 = sadd.s32 %s193, %s197
          %s199 = smul.addr %s198, 128
          %s200 = scalar_lea.hbm %s0, %s199
          %s201 = sshll.u32 %s192, 4
          %s202 = int_to_ptr.vmem [resolvable:$true] %s201
          %207 = dma.hbm_to_vmem [thread:$0]  %s200, 1024, %s202, %s189, 256, 256, 16
        $region24: #{tpu_custom_call.1} parent=19 // pred_fallthru
          _
        // Predicated region
        $region25: #{tpu_custom_call.1} parent=19 // pred_check
          %p208 = pneg %p80
        $region26: #{tpu_custom_call.1} parent=19 // pred_check_branch
          %210 = sbr.rel (%p208) target = $region28
        $region27: #{tpu_custom_call.1} parent=19 // pred_region
          %p211 = scmp.lt.s32.totalorder %s27, 1
          %s212 = scalar_select %p211, %s27, 1
          %s213 = smul.addr %s212, 2
          %s214 = smul.addr %s213, 8
          %s215 = scalar_lea.vmem %s1, %s214
        $region28: #{tpu_custom_call.1} parent=19 // pred_fallthru
          _
      $region20: #{tpu_custom_call.1} parent=5 // pred_fallthru
        _
      %p216 = scmp.le.s32.totalorder 1, %s20
      %p217 = scmp.lt.s32.totalorder %s20, 3
      %p218 = pnand %p216, %p217
      %p219 = pneg %p218
      // Predicated region
      $region29: #{tpu_custom_call.1} parent=5 // pred_check
        _
      $region30: #{tpu_custom_call.1} parent=5 // pred_check_branch
        %221 = sbr.rel (%p218) target = $region32
      $region31: #{tpu_custom_call.1} parent=5 // pred_region
        %s222 = ssub.s32 %s20, 1
        %s223 = sand.u32 %s47, 1
        %s224 = scalar_lea.sflag [#allocation3], %s223
        %s225 = sand.u32 %s47, 1
        %s226 = smul.addr %s225, 64
        %s227 = scalar_lea.vmem [#allocation2], %s226
        // Predicated region
        $region33: #{tpu_custom_call.1} parent=31 // pred_check
          %p228 = pneg %p60
        $region34: #{tpu_custom_call.1} parent=31 // pred_check_branch
          %230 = sbr.rel (%p228) target = $region36
        $region35: #{tpu_custom_call.1} parent=31 // pred_region
          %231 = dma.done %s224, 1024
        $region36: #{tpu_custom_call.1} parent=31 // pred_fallthru
          _
        %s232 = sand.u32 %s47, 1
        %s233 = scalar_lea.sflag [#allocation3], %s232
        %s234 = sand.u32 %s47, 1
        %s235 = smul.addr %s234, 64
        %s236 = scalar_lea.vmem [#allocation2], %s235
        %p237 = pneg %p60
        %p238 = pneg %p57
        %p239 = scmp.lt.s32.totalorder %s29, 1
        %s240 = scalar_select %p239, %s29, 1
        %s241 = smul.addr %s240, 2
        %s242 = smul.addr %s241, 8
        %s243 = scalar_lea.vmem %s1, %s242
        %p244 = pneg %p86
        %p245 = pneg %p83
        %p246 = pneg %p107
        %p247 = pneg %p104
        %p248 = pneg %p135
        %p249 = pneg %p132
        %s250 = sand.u32 %s122, 1
        %s251 = scalar_lea.sflag [#allocation4], %s250
        %s252 = sand.u32 %s122, 1
        %s253 = smul.addr %s252, 64
        %s254 = scalar_lea.vmem [#allocation5], %s253
        %p255 = pneg %p163
        %p256 = pneg %p160
        %s257 = sand.u32 %s150, 1
        %s258 = scalar_lea.sflag [#allocation7], %s257
        %s259 = sand.u32 %s150, 1
        %s260 = smul.addr %s259, 64
        %s261 = scalar_lea.vmem [#allocation6], %s260
        %s262 = smul.u32 2, %s30
        %p263 = scmp.lt.s32.totalorder %s29, 1
        %s264 = scalar_select %p263, %s29, 1
        %s265 = smul.addr %s264, 2
        %s266 = smul.addr %s265, 8
        %s267 = scalar_lea.vmem %s1, %s266
        %s268 = smul.u32 2, %s30
        %s269 = smul.u32 2, %s30
        %v270 = vld [vmem:[%s227] sm:$0xff]
        %v271 = vld [vmem:[%s227 + $0x8] sm:$0xff]
        %v272 = vld [vmem:[%s227 + $0x10] sm:$0xff]
        %v273 = vld [vmem:[%s227 + $0x18] sm:$0xff]
        %v274 = vld [vmem:[%s227 + $0x20] sm:$0xff]
        %v275 = vld [vmem:[%s227 + $0x28] sm:$0xff]
        %v276 = vld [vmem:[%s227 + $0x30] sm:$0xff]
        %v277 = vld [vmem:[%s227 + $0x38] sm:$0xff]
        %v278 = vld [vmem:[%s267] sm:$0xff]
        %v279 = vld [vmem:[%s267 + $0x8] sm:$0xff]
        %v280 = vld [vmem:[%s2] sm:$0xff]
        %v281 = vld [vmem:[%s2 + $0x8] sm:$0xff]
        %v282 = vld [vmem:[%s2 + $0x10] sm:$0xff]
        %v283 = vld [vmem:[%s2 + $0x18] sm:$0xff]
        %v284 = vld [vmem:[%s2 + $0x20] sm:$0xff]
        %v285 = vld [vmem:[%s2 + $0x28] sm:$0xff]
        %v286 = vld [vmem:[%s2 + $0x30] sm:$0xff]
        %v287 = vld [vmem:[%s2 + $0x38] sm:$0xff]
        %vm288 = vcmask 130048
        %v290 = vsel %vm288, %v280, 0
        %v293 = vsel %vm288, %v281, 0
        %v296 = vsel %vm288, %v282, 0
        %v299 = vsel %vm288, %v283, 0
        %v302 = vsel %vm288, %v284, 0
        %v305 = vsel %vm288, %v285, 0
        %v308 = vsel %vm288, %v286, 0
        %v311 = vsel %vm288, %v287, 0
        %313 = vmatprep.subr.mxu0 0.0
        %314 = vmatpush1.msra.mxu0 %v278
        %315 = vmatprep.subr.mxu0 0.0
        %316 = vmatpush1.msra.mxu0 %v279
        %317 = vmatprep.subr.mxu0 0.0
        %318 = vmatpush1.msra.mxu0 0.0
        %319 = vmatprep.subr.mxu0 0.0
        %320 = vmatpush1.msra.mxu0 0.0
        %321 = vmatprep.subr.mxu0 0.0
        %322 = vmatpush1.msra.mxu0 0.0
        %323 = vmatprep.subr.mxu0 0.0
        %324 = vmatpush1.msra.mxu0 0.0
        %325 = vmatprep.subr.mxu0 0.0
        %326 = vmatpush1.msra.mxu0 0.0
        %327 = vmatprep.subr.mxu0 0.0
        %328 = vmatpush1.msra.mxu0 0.0
        %329 = vmatprep.subr.mxu0 0.0
        %330 = vmatpush1.msra.mxu0 0.0
        %331 = vmatprep.subr.mxu0 0.0
        %332 = vmatpush1.msra.mxu0 0.0
        %333 = vmatprep.subr.mxu0 0.0
        %334 = vmatpush1.msra.mxu0 0.0
        %335 = vmatprep.subr.mxu0 0.0
        %336 = vmatpush1.msra.mxu0 0.0
        %337 = vmatprep.subr.mxu0 0.0
        %338 = vmatpush1.msra.mxu0 0.0
        %339 = vmatprep.subr.mxu0 0.0
        %340 = vmatpush1.msra.mxu0 0.0
        %341 = vmatprep.subr.mxu0 0.0
        %342 = vmatpush1.msra.mxu0 0.0
        %343 = vmatprep.subr.mxu0 0.0
        %344 = vmatpush1.msra.mxu0 0.0
        %345 = vmatprep.subr.mxu0 0.0
        %346 = vmatpush1.msra.mxu0 0.0
        %347 = vmatprep.subr.mxu0 0.0
        %348 = vmatpush1.msra.mxu0 0.0
        %349 = vmatprep.subr.mxu0 0.0
        %350 = vmatpush1.msra.mxu0 0.0
        %351 = vmatprep.subr.mxu0 0.0
        %352 = vmatpush1.msra.mxu0 0.0
        %353 = vmatprep.subr.mxu0 0.0
        %354 = vmatpush1.msra.mxu0 0.0
        %355 = vmatprep.subr.mxu0 0.0
        %356 = vmatpush1.msra.mxu0 0.0
        %357 = vmatprep.subr.mxu0 0.0
        %358 = vmatpush1.msra.mxu0 0.0
        %359 = vmatprep.subr.mxu0 0.0
        %360 = vmatpush1.msra.mxu0 0.0
        %361 = vmatprep.subr.mxu0 0.0
        %362 = vmatpush1.msra.mxu0 0.0
        %363 = vmatprep.subr.mxu0 0.0
        %364 = vmatpush1.msra.mxu0 0.0
        %365 = vmatprep.subr.mxu0 0.0
        %366 = vmatpush1.msra.mxu0 0.0
        %367 = vmatprep.subr.mxu0 0.0
        %368 = vmatpush1.msra.mxu0 0.0
        %369 = vmatprep.subr.mxu0 0.0
        %370 = vmatpush1.msra.mxu0 0.0
        %371 = vmatprep.subr.mxu0 0.0
        %372 = vmatpush1.msra.mxu0 0.0
        %373 = vmatprep.subr.mxu0 0.0
        %374 = vmatpush1.msra.mxu0 0.0
        %375 = vmatprep.subr.mxu0 0.0
        %376 = vmatpush1.msra.mxu0 0.0
        %377 = vmatprep.mubr.f32.mxu0 0.0
        %378 = vmatmul.mubr.f32.gmra.mrb[0].mxu0 %v290
        %v379 = vpop.f32.mrb[0].mxu0
        %v380 = vadd.f32 0.0, %v379
        %v381 = vpop.f32.mrb[0].mxu0
        %382 = vmatprep.mubr.f32.mxu0 0.0
        %383 = vmatmul.mubr.f32.gmra.mrb[0].mxu0 %v293
        %v384 = vpop.f32.mrb[0].mxu0
        %v385 = vadd.f32 0.0, %v384
        %v386 = vpop.f32.mrb[0].mxu0
        %387 = vmatprep.mubr.f32.mxu0 0.0
        %388 = vmatmul.mubr.f32.gmra.mrb[0].mxu0 %v296
        %v389 = vpop.f32.mrb[0].mxu0
        %v390 = vadd.f32 0.0, %v389
        %v391 = vpop.f32.mrb[0].mxu0
        %392 = vmatprep.mubr.f32.mxu0 0.0
        %393 = vmatmul.mubr.f32.gmra.mrb[0].mxu0 %v299
        %v394 = vpop.f32.mrb[0].mxu0
        %v395 = vadd.f32 0.0, %v394
        %v396 = vpop.f32.mrb[0].mxu0
        %397 = vmatprep.mubr.f32.mxu0 0.0
        %398 = vmatmul.mubr.f32.gmra.mrb[0].mxu0 %v302
        %v399 = vpop.f32.mrb[0].mxu0
        %v400 = vadd.f32 0.0, %v399
        %v401 = vpop.f32.mrb[0].mxu0
        %402 = vmatprep.mubr.f32.mxu0 0.0
        %403 = vmatmul.mubr.f32.gmra.mrb[0].mxu0 %v305
        %v404 = vpop.f32.mrb[0].mxu0
        %v405 = vadd.f32 0.0, %v404
        %v406 = vpop.f32.mrb[0].mxu0
        %407 = vmatprep.mubr.f32.mxu0 0.0
        %408 = vmatmul.mubr.f32.gmra.mrb[0].mxu0 %v308
        %v409 = vpop.f32.mrb[0].mxu0
        %v410 = vadd.f32 0.0, %v409
        %v411 = vpop.f32.mrb[0].mxu0
        %412 = vmatprep.mubr.f32.mxu0 0.0
        %413 = vmatmul.mubr.f32.gmra.mrb[0].mxu0 %v311
        %v414 = vpop.f32.mrb[0].mxu0
        %v415 = vadd.f32 0.0, %v414
        %v416 = vpop.f32.mrb[0].mxu0
        %417 = vdwg.mxu0
        %418 = vxpose.xlu0.b32.start [1/16] %v380, 128
        %419 = vxpose.xlu0.b32.cont [2/16] %v385, 128
        %420 = vxpose.xlu0.b32.cont [3/16] %v390, 128
        %421 = vxpose.xlu0.b32.cont [4/16] %v395, 128
        %422 = vxpose.xlu0.b32.cont [5/16] 0.0, 128
        %423 = vxpose.xlu0.b32.cont [6/16] 0.0, 128
        %424 = vxpose.xlu0.b32.cont [7/16] 0.0, 128
        %425 = vxpose.xlu0.b32.cont [8/16] 0.0, 128
        %426 = vxpose.xlu0.b32.cont [9/16] 0.0, 128
        %427 = vxpose.xlu0.b32.cont [10/16] 0.0, 128
        %428 = vxpose.xlu0.b32.cont [11/16] 0.0, 128
        %429 = vxpose.xlu0.b32.cont [12/16] 0.0, 128
        %430 = vxpose.xlu0.b32.cont [13/16] 0.0, 128
        %431 = vxpose.xlu0.b32.cont [14/16] 0.0, 128
        %432 = vxpose.xlu0.b32.cont [15/16] 0.0, 128
        %433 = vxpose.xlu0.b32.end [16/16] 0.0, 128
        %v434 = vpop.trf.xlu0
        %v435 = vpop.trf.xlu0
        %v436 = vpop.trf.xlu0
        %v437 = vpop.trf.xlu0
        %v438 = vpop.trf.xlu0
        %v439 = vpop.trf.xlu0
        %v440 = vpop.trf.xlu0
        %v441 = vpop.trf.xlu0
        %v442 = vpop.trf.xlu0
        %v443 = vpop.trf.xlu0
        %v444 = vpop.trf.xlu0
        %v445 = vpop.trf.xlu0
        %v446 = vpop.trf.xlu0
        %v447 = vpop.trf.xlu0
        %v448 = vpop.trf.xlu0
        %v449 = vpop.trf.xlu0
        %vm450 = vcmask 261120
        %v452 = vsel %vm450, %v434, 0
        %v455 = vsel %vm450, %v435, 0
        %v458 = vsel %vm450, %v436, 0
        %v461 = vsel %vm450, %v437, 0
        %463 = vmatprep.subr.mxu0 %v271
        %464 = vmatpush1.msra.mxu0 %v270
        %465 = vmatprep.subr.mxu0 %v273
        %466 = vmatpush1.msra.mxu0 %v272
        %467 = vmatprep.subr.mxu0 %v275
        %468 = vmatpush1.msra.mxu0 %v274
        %469 = vmatprep.subr.mxu0 %v277
        %470 = vmatpush1.msra.mxu0 %v276
        %471 = vmatprep.subr.mxu0 0.0
        %472 = vmatpush1.msra.mxu0 0.0
        %473 = vmatprep.subr.mxu0 0.0
        %474 = vmatpush1.msra.mxu0 0.0
        %475 = vmatprep.subr.mxu0 0.0
        %476 = vmatpush1.msra.mxu0 0.0
        %477 = vmatprep.subr.mxu0 0.0
        %478 = vmatpush1.msra.mxu0 0.0
        %479 = vmatprep.subr.mxu0 0.0
        %480 = vmatpush1.msra.mxu0 0.0
        %481 = vmatprep.subr.mxu0 0.0
        %482 = vmatpush1.msra.mxu0 0.0
        %483 = vmatprep.subr.mxu0 0.0
        %484 = vmatpush1.msra.mxu0 0.0
        %485 = vmatprep.subr.mxu0 0.0
        %486 = vmatpush1.msra.mxu0 0.0
        %487 = vmatprep.subr.mxu0 0.0
        %488 = vmatpush1.msra.mxu0 0.0
        %489 = vmatprep.subr.mxu0 0.0
        %490 = vmatpush1.msra.mxu0 0.0
        %491 = vmatprep.subr.mxu0 0.0
        %492 = vmatpush1.msra.mxu0 0.0
        %493 = vmatprep.subr.mxu0 0.0
        %494 = vmatpush1.msra.mxu0 0.0
        %495 = vmatprep.subr.mxu0 0.0
        %496 = vmatpush1.msra.mxu0 0.0
        %497 = vmatprep.subr.mxu0 0.0
        %498 = vmatpush1.msra.mxu0 0.0
        %499 = vmatprep.subr.mxu0 0.0
        %500 = vmatpush1.msra.mxu0 0.0
        %501 = vmatprep.subr.mxu0 0.0
        %502 = vmatpush1.msra.mxu0 0.0
        %503 = vmatprep.subr.mxu0 0.0
        %504 = vmatpush1.msra.mxu0 0.0
        %505 = vmatprep.subr.mxu0 0.0
        %506 = vmatpush1.msra.mxu0 0.0
        %507 = vmatprep.subr.mxu0 0.0
        %508 = vmatpush1.msra.mxu0 0.0
        %509 = vmatprep.subr.mxu0 0.0
        %510 = vmatpush1.msra.mxu0 0.0
        %511 = vmatprep.subr.mxu0 0.0
        %512 = vmatpush1.msra.mxu0 0.0
        %513 = vmatprep.subr.mxu0 0.0
        %514 = vmatpush1.msra.mxu0 0.0
        %515 = vmatprep.subr.mxu0 0.0
        %516 = vmatpush1.msra.mxu0 0.0
        %517 = vmatprep.subr.mxu0 0.0
        %518 = vmatpush1.msra.mxu0 0.0
        %519 = vmatprep.subr.mxu0 0.0
        %520 = vmatpush1.msra.mxu0 0.0
        %521 = vmatprep.subr.mxu0 0.0
        %522 = vmatpush1.msra.mxu0 0.0
        %523 = vmatprep.subr.mxu0 0.0
        %524 = vmatpush1.msra.mxu0 0.0
        %525 = vmatprep.subr.mxu0 0.0
        %526 = vmatpush1.msra.mxu0 0.0
        %527 = vmatprep.mubr.f32.mxu0 0.0
        %528 = vmatmul.mubr.f32.gmra.mrb[0].mxu0 %v452
        %v529 = vpop.f32.mrb[0].mxu0
        %v530 = vadd.f32 0.0, %v529
        %v531 = vpop.f32.mrb[0].mxu0
        %v532 = vadd.f32 0.0, %v531
        %533 = vmatprep.mubr.f32.mxu0 0.0
        %534 = vmatmul.mubr.f32.gmra.mrb[0].mxu0 %v455
        %v535 = vpop.f32.mrb[0].mxu0
        %v536 = vadd.f32 0.0, %v535
        %v537 = vpop.f32.mrb[0].mxu0
        %v538 = vadd.f32 0.0, %v537
        %539 = vmatprep.mubr.f32.mxu0 0.0
        %540 = vmatmul.mubr.f32.gmra.mrb[0].mxu0 %v458
        %v541 = vpop.f32.mrb[0].mxu0
        %v542 = vadd.f32 0.0, %v541
        %v543 = vpop.f32.mrb[0].mxu0
        %v544 = vadd.f32 0.0, %v543
        %545 = vmatprep.mubr.f32.mxu0 0.0
        %546 = vmatmul.mubr.f32.gmra.mrb[0].mxu0 %v461
        %v547 = vpop.f32.mrb[0].mxu0
        %v548 = vadd.f32 0.0, %v547
        %v549 = vpop.f32.mrb[0].mxu0
        %v550 = vadd.f32 0.0, %v549
        %551 = vdwg.mxu0
        %v552 = vmax.f32 %v530, %v542
        %v553 = vmax.f32 %v536, %v548
        %v554 = vmax.f32 %v552, %v553
        %v555 = vrot.slane %v554, 4
        %v556 = vmax.f32 %v554, %v555
        %v557 = vrot.slane %v556, 2
        %v558 = vmax.f32 %v556, %v557
        %v559 = vrot.slane %v558, 1
        %v560 = vmax.f32 %v558, %v559
        %v561 = vmax.f32 %v532, %v544
        %v562 = vmax.f32 %v538, %v550
        %v563 = vmax.f32 %v561, %v562
        %v564 = vrot.slane %v563, 4
        %v565 = vmax.f32 %v563, %v564
        %v566 = vrot.slane %v565, 2
        %v567 = vmax.f32 %v565, %v566
        %v568 = vrot.slane %v567, 1
        %v569 = vmax.f32 %v567, %v568
        %v570 = vsub.f32 %v530, %v560
        %v571 = vsub.f32 %v532, %v569
        %v572 = vsub.f32 %v536, %v560
        %v573 = vsub.f32 %v538, %v569
        %v574 = vsub.f32 %v542, %v560
        %v575 = vsub.f32 %v544, %v569
        %v576 = vsub.f32 %v548, %v560
        %v577 = vsub.f32 %v550, %v569
        %v578 = vmul.f32 %v570, 1.442695
        %v579 = vpow.pop %v578
        %v580 = vmul.f32 %v571, 1.442695
        %v581 = vpow.pop %v580
        %v582 = vmul.f32 %v572, 1.442695
        %v583 = vpow.pop %v582
        %v584 = vmul.f32 %v573, 1.442695
        %v585 = vpow.pop %v584
        %v586 = vmul.f32 %v574, 1.442695
        %v587 = vpow.pop %v586
        %v588 = vmul.f32 %v575, 1.442695
        %v589 = vpow.pop %v588
        %v590 = vmul.f32 %v576, 1.442695
        %v591 = vpow.pop %v590
        %v592 = vmul.f32 %v577, 1.442695
        %v593 = vpow.pop %v592
        %v594 = vadd.f32 %v579, %v583
        %v595 = vadd.f32 %v594, %v587
        %v596 = vadd.f32 %v595, %v591
        %v597 = vrot.slane %v596, 4
        %v598 = vadd.f32 %v596, %v597
        %v599 = vrot.slane %v598, 2
        %v600 = vadd.f32 %v598, %v599
        %v601 = vrot.slane %v600, 1
        %v602 = vadd.f32 %v600, %v601
        %v603 = vadd.f32 %v581, %v585
        %v604 = vadd.f32 %v603, %v589
        %v605 = vadd.f32 %v604, %v593
        %v606 = vrot.slane %v605, 4
        %v607 = vadd.f32 %v605, %v606
        %v608 = vrot.slane %v607, 2
        %v609 = vadd.f32 %v607, %v608
        %v610 = vrot.slane %v609, 1
        %v611 = vadd.f32 %v609, %v610
        %v612 = vrcp.pop %v602
        %v613 = vrcp.pop %v611
        %v614 = vmul.f32 %v579, %v612
        %v615 = vmul.f32 %v581, %v613
        %v616 = vmul.f32 %v583, %v612
        %v617 = vmul.f32 %v585, %v613
        %v618 = vmul.f32 %v587, %v612
        %v619 = vmul.f32 %v589, %v613
        %v620 = vmul.f32 %v591, %v612
        %v621 = vmul.f32 %v593, %v613
        %v622 = vadd.f32 %v614, 0.0
        %v623 = vadd.f32 %v615, 0.0
        %v624 = vadd.f32 %v616, 0.0
        %v625 = vadd.f32 %v617, 0.0
        %v626 = vadd.f32 %v618, 0.0
        %v627 = vadd.f32 %v619, 0.0
        %v628 = vadd.f32 %v620, 0.0
        %v629 = vadd.f32 %v621, 0.0
        %630 = vxpose.xlu0.b32.start [1/16] %v400, 128
        %631 = vxpose.xlu0.b32.cont [2/16] %v405, 128
        %632 = vxpose.xlu0.b32.cont [3/16] %v410, 128
        %633 = vxpose.xlu0.b32.cont [4/16] %v415, 128
        %634 = vxpose.xlu0.b32.cont [5/16] 0.0, 128
        %635 = vxpose.xlu0.b32.cont [6/16] 0.0, 128
        %636 = vxpose.xlu0.b32.cont [7/16] 0.0, 128
        %637 = vxpose.xlu0.b32.cont [8/16] 0.0, 128
        %638 = vxpose.xlu0.b32.cont [9/16] 0.0, 128
        %639 = vxpose.xlu0.b32.cont [10/16] 0.0, 128
        %640 = vxpose.xlu0.b32.cont [11/16] 0.0, 128
        %641 = vxpose.xlu0.b32.cont [12/16] 0.0, 128
        %642 = vxpose.xlu0.b32.cont [13/16] 0.0, 128
        %643 = vxpose.xlu0.b32.cont [14/16] 0.0, 128
        %644 = vxpose.xlu0.b32.cont [15/16] 0.0, 128
        %645 = vxpose.xlu0.b32.end [16/16] 0.0, 128
        %v646 = vpop.trf.xlu0
        %v647 = vpop.trf.xlu0
        %v648 = vpop.trf.xlu0
        %v649 = vpop.trf.xlu0
        %v650 = vpop.trf.xlu0
        %v651 = vpop.trf.xlu0
        %v652 = vpop.trf.xlu0
        %v653 = vpop.trf.xlu0
        %v654 = vpop.trf.xlu0
        %v655 = vpop.trf.xlu0
        %v656 = vpop.trf.xlu0
        %v657 = vpop.trf.xlu0
        %v658 = vpop.trf.xlu0
        %v659 = vpop.trf.xlu0
        %v660 = vpop.trf.xlu0
        %v661 = vpop.trf.xlu0
        %v663 = vsel %vm450, %v646, 0
        %v666 = vsel %vm450, %v647, 0
        %v669 = vsel %vm450, %v648, 0
        %v672 = vsel %vm450, %v649, 0
        %674 = vmatprep.subr.mxu0 %v271
        %675 = vmatpush1.msra.mxu0 %v270
        %676 = vmatprep.subr.mxu0 %v273
        %677 = vmatpush1.msra.mxu0 %v272
        %678 = vmatprep.subr.mxu0 %v275
        %679 = vmatpush1.msra.mxu0 %v274
        %680 = vmatprep.subr.mxu0 %v277
        %681 = vmatpush1.msra.mxu0 %v276
        %682 = vmatprep.subr.mxu0 0.0
        %683 = vmatpush1.msra.mxu0 0.0
        %684 = vmatprep.subr.mxu0 0.0
        %685 = vmatpush1.msra.mxu0 0.0
        %686 = vmatprep.subr.mxu0 0.0
        %687 = vmatpush1.msra.mxu0 0.0
        %688 = vmatprep.subr.mxu0 0.0
        %689 = vmatpush1.msra.mxu0 0.0
        %690 = vmatprep.subr.mxu0 0.0
        %691 = vmatpush1.msra.mxu0 0.0
        %692 = vmatprep.subr.mxu0 0.0
        %693 = vmatpush1.msra.mxu0 0.0
        %694 = vmatprep.subr.mxu0 0.0
        %695 = vmatpush1.msra.mxu0 0.0
        %696 = vmatprep.subr.mxu0 0.0
        %697 = vmatpush1.msra.mxu0 0.0
        %698 = vmatprep.subr.mxu0 0.0
        %699 = vmatpush1.msra.mxu0 0.0
        %700 = vmatprep.subr.mxu0 0.0
        %701 = vmatpush1.msra.mxu0 0.0
        %702 = vmatprep.subr.mxu0 0.0
        %703 = vmatpush1.msra.mxu0 0.0
        %704 = vmatprep.subr.mxu0 0.0
        %705 = vmatpush1.msra.mxu0 0.0
        %706 = vmatprep.subr.mxu0 0.0
        %707 = vmatpush1.msra.mxu0 0.0
        %708 = vmatprep.subr.mxu0 0.0
        %709 = vmatpush1.msra.mxu0 0.0
        %710 = vmatprep.subr.mxu0 0.0
        %711 = vmatpush1.msra.mxu0 0.0
        %712 = vmatprep.subr.mxu0 0.0
        %713 = vmatpush1.msra.mxu0 0.0
        %714 = vmatprep.subr.mxu0 0.0
        %715 = vmatpush1.msra.mxu0 0.0
        %716 = vmatprep.subr.mxu0 0.0
        %717 = vmatpush1.msra.mxu0 0.0
        %718 = vmatprep.subr.mxu0 0.0
        %719 = vmatpush1.msra.mxu0 0.0
        %720 = vmatprep.subr.mxu0 0.0
        %721 = vmatpush1.msra.mxu0 0.0
        %722 = vmatprep.subr.mxu0 0.0
        %723 = vmatpush1.msra.mxu0 0.0
        %724 = vmatprep.subr.mxu0 0.0
        %725 = vmatpush1.msra.mxu0 0.0
        %726 = vmatprep.subr.mxu0 0.0
        %727 = vmatpush1.msra.mxu0 0.0
        %728 = vmatprep.subr.mxu0 0.0
        %729 = vmatpush1.msra.mxu0 0.0
        %730 = vmatprep.subr.mxu0 0.0
        %731 = vmatpush1.msra.mxu0 0.0
        %732 = vmatprep.subr.mxu0 0.0
        %733 = vmatpush1.msra.mxu0 0.0
        %734 = vmatprep.subr.mxu0 0.0
        %735 = vmatpush1.msra.mxu0 0.0
        %736 = vmatprep.subr.mxu0 0.0
        %737 = vmatpush1.msra.mxu0 0.0
        %738 = vmatprep.mubr.f32.mxu0 0.0
        %739 = vmatmul.mubr.f32.gmra.mrb[0].mxu0 %v663
        %v740 = vpop.f32.mrb[0].mxu0
        %v741 = vadd.f32 0.0, %v740
        %v742 = vpop.f32.mrb[0].mxu0
        %v743 = vadd.f32 0.0, %v742
        %744 = vmatprep.mubr.f32.mxu0 0.0
        %745 = vmatmul.mubr.f32.gmra.mrb[0].mxu0 %v666
        %v746 = vpop.f32.mrb[0].mxu0
        %v747 = vadd.f32 0.0, %v746
        %v748 = vpop.f32.mrb[0].mxu0
        %v749 = vadd.f32 0.0, %v748
        %750 = vmatprep.mubr.f32.mxu0 0.0
        %751 = vmatmul.mubr.f32.gmra.mrb[0].mxu0 %v669
        %v752 = vpop.f32.mrb[0].mxu0
        %v753 = vadd.f32 0.0, %v752
        %v754 = vpop.f32.mrb[0].mxu0
        %v755 = vadd.f32 0.0, %v754
        %756 = vmatprep.mubr.f32.mxu0 0.0
        %757 = vmatmul.mubr.f32.gmra.mrb[0].mxu0 %v672
        %v758 = vpop.f32.mrb[0].mxu0
        %v759 = vadd.f32 0.0, %v758
        %v760 = vpop.f32.mrb[0].mxu0
        %v761 = vadd.f32 0.0, %v760
        %762 = vdwg.mxu0
        %v763 = vmax.f32 %v741, %v753
        %v764 = vmax.f32 %v747, %v759
        %v765 = vmax.f32 %v763, %v764
        %v766 = vrot.slane %v765, 4
        %v767 = vmax.f32 %v765, %v766
        %v768 = vrot.slane %v767, 2
        %v769 = vmax.f32 %v767, %v768
        %v770 = vrot.slane %v769, 1
        %v771 = vmax.f32 %v769, %v770
        %v772 = vmax.f32 %v743, %v755
        %v773 = vmax.f32 %v749, %v761
        %v774 = vmax.f32 %v772, %v773
        %v775 = vrot.slane %v774, 4
        %v776 = vmax.f32 %v774, %v775
        %v777 = vrot.slane %v776, 2
        %v778 = vmax.f32 %v776, %v777
        %v779 = vrot.slane %v778, 1
        %v780 = vmax.f32 %v778, %v779
        %v781 = vsub.f32 %v741, %v771
        %v782 = vsub.f32 %v743, %v780
        %v783 = vsub.f32 %v747, %v771
        %v784 = vsub.f32 %v749, %v780
        %v785 = vsub.f32 %v753, %v771
        %v786 = vsub.f32 %v755, %v780
        %v787 = vsub.f32 %v759, %v771
        %v788 = vsub.f32 %v761, %v780
        %v789 = vmul.f32 %v781, 1.442695
        %v790 = vpow.pop %v789
        %v791 = vmul.f32 %v782, 1.442695
        %v792 = vpow.pop %v791
        %v793 = vmul.f32 %v783, 1.442695
        %v794 = vpow.pop %v793
        %v795 = vmul.f32 %v784, 1.442695
        %v796 = vpow.pop %v795
        %v797 = vmul.f32 %v785, 1.442695
        %v798 = vpow.pop %v797
        %v799 = vmul.f32 %v786, 1.442695
        %v800 = vpow.pop %v799
        %v801 = vmul.f32 %v787, 1.442695
        %v802 = vpow.pop %v801
        %v803 = vmul.f32 %v788, 1.442695
        %v804 = vpow.pop %v803
        %v805 = vadd.f32 %v790, %v794
        %v806 = vadd.f32 %v805, %v798
        %v807 = vadd.f32 %v806, %v802
        %v808 = vrot.slane %v807, 4
        %v809 = vadd.f32 %v807, %v808
        %v810 = vrot.slane %v809, 2
        %v811 = vadd.f32 %v809, %v810
        %v812 = vrot.slane %v811, 1
        %v813 = vadd.f32 %v811, %v812
        %v814 = vadd.f32 %v792, %v796
        %v815 = vadd.f32 %v814, %v800
        %v816 = vadd.f32 %v815, %v804
        %v817 = vrot.slane %v816, 4
        %v818 = vadd.f32 %v816, %v817
        %v819 = vrot.slane %v818, 2
        %v820 = vadd.f32 %v818, %v819
        %v821 = vrot.slane %v820, 1
        %v822 = vadd.f32 %v820, %v821
        %v823 = vrcp.pop %v813
        %v824 = vrcp.pop %v822
        %v825 = vmul.f32 %v790, %v823
        %v826 = vmul.f32 %v792, %v824
        %v827 = vmul.f32 %v794, %v823
        %v828 = vmul.f32 %v796, %v824
        %v829 = vmul.f32 %v798, %v823
        %v830 = vmul.f32 %v800, %v824
        %v831 = vmul.f32 %v802, %v823
        %v832 = vmul.f32 %v804, %v824
        %v834 = vsel %vm450, %v400, 0
        %v837 = vsel %vm450, %v405, 0
        %v840 = vsel %vm450, %v410, 0
        %v843 = vsel %vm450, %v415, 0
        %845 = vmatprep.subr.mxu0 %v826
        %846 = vmatpush1.msra.mxu0 %v825
        %847 = vmatprep.subr.mxu0 %v828
        %848 = vmatpush1.msra.mxu0 %v827
        %849 = vmatprep.subr.mxu0 %v830
        %850 = vmatpush1.msra.mxu0 %v829
        %851 = vmatprep.subr.mxu0 %v832
        %852 = vmatpush1.msra.mxu0 %v831
        %853 = vmatprep.subr.mxu0 0.0
        %854 = vmatpush1.msra.mxu0 0.0
        %855 = vmatprep.subr.mxu0 0.0
        %856 = vmatpush1.msra.mxu0 0.0
        %857 = vmatprep.subr.mxu0 0.0
        %858 = vmatpush1.msra.mxu0 0.0
        %859 = vmatprep.subr.mxu0 0.0
        %860 = vmatpush1.msra.mxu0 0.0
        %861 = vmatprep.subr.mxu0 0.0
        %862 = vmatpush1.msra.mxu0 0.0
        %863 = vmatprep.subr.mxu0 0.0
        %864 = vmatpush1.msra.mxu0 0.0
        %865 = vmatprep.subr.mxu0 0.0
        %866 = vmatpush1.msra.mxu0 0.0
        %867 = vmatprep.subr.mxu0 0.0
        %868 = vmatpush1.msra.mxu0 0.0
        %869 = vmatprep.subr.mxu0 0.0
        %870 = vmatpush1.msra.mxu0 0.0
        %871 = vmatprep.subr.mxu0 0.0
        %872 = vmatpush1.msra.mxu0 0.0
        %873 = vmatprep.subr.mxu0 0.0
        %874 = vmatpush1.msra.mxu0 0.0
        %875 = vmatprep.subr.mxu0 0.0
        %876 = vmatpush1.msra.mxu0 0.0
        %877 = vmatprep.subr.mxu0 0.0
        %878 = vmatpush1.msra.mxu0 0.0
        %879 = vmatprep.subr.mxu0 0.0
        %880 = vmatpush1.msra.mxu0 0.0
        %881 = vmatprep.subr.mxu0 0.0
        %882 = vmatpush1.msra.mxu0 0.0
        %883 = vmatprep.subr.mxu0 0.0
        %884 = vmatpush1.msra.mxu0 0.0
        %885 = vmatprep.subr.mxu0 0.0
        %886 = vmatpush1.msra.mxu0 0.0
        %887 = vmatprep.subr.mxu0 0.0
        %888 = vmatpush1.msra.mxu0 0.0
        %889 = vmatprep.subr.mxu0 0.0
        %890 = vmatpush1.msra.mxu0 0.0
        %891 = vmatprep.subr.mxu0 0.0
        %892 = vmatpush1.msra.mxu0 0.0
        %893 = vmatprep.subr.mxu0 0.0
        %894 = vmatpush1.msra.mxu0 0.0
        %895 = vmatprep.subr.mxu0 0.0
        %896 = vmatpush1.msra.mxu0 0.0
        %897 = vmatprep.subr.mxu0 0.0
        %898 = vmatpush1.msra.mxu0 0.0
        %899 = vmatprep.subr.mxu0 0.0
        %900 = vmatpush1.msra.mxu0 0.0
        %901 = vmatprep.subr.mxu0 0.0
        %902 = vmatpush1.msra.mxu0 0.0
        %903 = vmatprep.subr.mxu0 0.0
        %904 = vmatpush1.msra.mxu0 0.0
        %905 = vmatprep.subr.mxu0 0.0
        %906 = vmatpush1.msra.mxu0 0.0
        %907 = vmatprep.subr.mxu0 0.0
        %908 = vmatpush1.msra.mxu0 0.0
        %909 = vmatprep.mubr.f32.mxu0 0.0
        %910 = vmatmul.mubr.f32.gmra.mrb[0].mxu0 %v834
        %v911 = vpop.f32.mrb[0].mxu0
        %v912 = vadd.f32 0.0, %v911
        %v913 = vpop.f32.mrb[0].mxu0
        %v914 = vadd.f32 0.0, %v913
        %915 = vmatprep.mubr.f32.mxu0 0.0
        %916 = vmatmul.mubr.f32.gmra.mrb[0].mxu0 %v837
        %v917 = vpop.f32.mrb[0].mxu0
        %v918 = vadd.f32 0.0, %v917
        %v919 = vpop.f32.mrb[0].mxu0
        %v920 = vadd.f32 0.0, %v919
        %921 = vmatprep.mubr.f32.mxu0 0.0
        %922 = vmatmul.mubr.f32.gmra.mrb[0].mxu0 %v840
        %v923 = vpop.f32.mrb[0].mxu0
        %v924 = vadd.f32 0.0, %v923
        %v925 = vpop.f32.mrb[0].mxu0
        %v926 = vadd.f32 0.0, %v925
        %927 = vmatprep.mubr.f32.mxu0 0.0
        %928 = vmatmul.mubr.f32.gmra.mrb[0].mxu0 %v843
        %v929 = vpop.f32.mrb[0].mxu0
        %v930 = vadd.f32 0.0, %v929
        %v931 = vpop.f32.mrb[0].mxu0
        %v932 = vadd.f32 0.0, %v931
        %933 = vdwg.mxu0
        %v935 = vsel %vm450, %v380, 0
        %v938 = vsel %vm450, %v385, 0
        %v941 = vsel %vm450, %v390, 0
        %v944 = vsel %vm450, %v395, 0
        %946 = vmatprep.subr.mxu0 %v615
        %947 = vmatpush1.msra.mxu0 %v614
        %948 = vmatprep.subr.mxu0 %v617
        %949 = vmatpush1.msra.mxu0 %v616
        %950 = vmatprep.subr.mxu0 %v619
        %951 = vmatpush1.msra.mxu0 %v618
        %952 = vmatprep.subr.mxu0 %v621
        %953 = vmatpush1.msra.mxu0 %v620
        %954 = vmatprep.subr.mxu0 0.0
        %955 = vmatpush1.msra.mxu0 0.0
        %956 = vmatprep.subr.mxu0 0.0
        %957 = vmatpush1.msra.mxu0 0.0
        %958 = vmatprep.subr.mxu0 0.0
        %959 = vmatpush1.msra.mxu0 0.0
        %960 = vmatprep.subr.mxu0 0.0
        %961 = vmatpush1.msra.mxu0 0.0
        %962 = vmatprep.subr.mxu0 0.0
        %963 = vmatpush1.msra.mxu0 0.0
        %964 = vmatprep.subr.mxu0 0.0
        %965 = vmatpush1.msra.mxu0 0.0
        %966 = vmatprep.subr.mxu0 0.0
        %967 = vmatpush1.msra.mxu0 0.0
        %968 = vmatprep.subr.mxu0 0.0
        %969 = vmatpush1.msra.mxu0 0.0
        %970 = vmatprep.subr.mxu0 0.0
        %971 = vmatpush1.msra.mxu0 0.0
        %972 = vmatprep.subr.mxu0 0.0
        %973 = vmatpush1.msra.mxu0 0.0
        %974 = vmatprep.subr.mxu0 0.0
        %975 = vmatpush1.msra.mxu0 0.0
        %976 = vmatprep.subr.mxu0 0.0
        %977 = vmatpush1.msra.mxu0 0.0
        %978 = vmatprep.subr.mxu0 0.0
        %979 = vmatpush1.msra.mxu0 0.0
        %980 = vmatprep.subr.mxu0 0.0
        %981 = vmatpush1.msra.mxu0 0.0
        %982 = vmatprep.subr.mxu0 0.0
        %983 = vmatpush1.msra.mxu0 0.0
        %984 = vmatprep.subr.mxu0 0.0
        %985 = vmatpush1.msra.mxu0 0.0
        %986 = vmatprep.subr.mxu0 0.0
        %987 = vmatpush1.msra.mxu0 0.0
        %988 = vmatprep.subr.mxu0 0.0
        %989 = vmatpush1.msra.mxu0 0.0
        %990 = vmatprep.subr.mxu0 0.0
        %991 = vmatpush1.msra.mxu0 0.0
        %992 = vmatprep.subr.mxu0 0.0
        %993 = vmatpush1.msra.mxu0 0.0
        %994 = vmatprep.subr.mxu0 0.0
        %995 = vmatpush1.msra.mxu0 0.0
        %996 = vmatprep.subr.mxu0 0.0
        %997 = vmatpush1.msra.mxu0 0.0
        %998 = vmatprep.subr.mxu0 0.0
        %999 = vmatpush1.msra.mxu0 0.0
        %1000 = vmatprep.subr.mxu0 0.0
        %1001 = vmatpush1.msra.mxu0 0.0
        %1002 = vmatprep.subr.mxu0 0.0
        %1003 = vmatpush1.msra.mxu0 0.0
        %1004 = vmatprep.subr.mxu0 0.0
        %1005 = vmatpush1.msra.mxu0 0.0
        %1006 = vmatprep.subr.mxu0 0.0
        %1007 = vmatpush1.msra.mxu0 0.0
        %1008 = vmatprep.subr.mxu0 0.0
        %1009 = vmatpush1.msra.mxu0 0.0
        %1010 = vmatprep.mubr.f32.mxu0 0.0
        %1011 = vmatmul.mubr.f32.gmra.mrb[0].mxu0 %v935
        %v1012 = vpop.f32.mrb[0].mxu0
        %v1013 = vadd.f32 %v912, %v1012
        %v1014 = vpop.f32.mrb[0].mxu0
        %v1015 = vadd.f32 %v914, %v1014
        %1016 = vmatprep.mubr.f32.mxu0 0.0
        %1017 = vmatmul.mubr.f32.gmra.mrb[0].mxu0 %v938
        %v1018 = vpop.f32.mrb[0].mxu0
        %v1019 = vadd.f32 %v918, %v1018
        %v1020 = vpop.f32.mrb[0].mxu0
        %v1021 = vadd.f32 %v920, %v1020
        %1022 = vmatprep.mubr.f32.mxu0 0.0
        %1023 = vmatmul.mubr.f32.gmra.mrb[0].mxu0 %v941
        %v1024 = vpop.f32.mrb[0].mxu0
        %v1025 = vadd.f32 %v924, %v1024
        %v1026 = vpop.f32.mrb[0].mxu0
        %v1027 = vadd.f32 %v926, %v1026
        %1028 = vmatprep.mubr.f32.mxu0 0.0
        %1029 = vmatmul.mubr.f32.gmra.mrb[0].mxu0 %v944
        %v1030 = vpop.f32.mrb[0].mxu0
        %v1031 = vadd.f32 %v930, %v1030
        %v1032 = vpop.f32.mrb[0].mxu0
        %v1033 = vadd.f32 %v932, %v1032
        %1034 = vdwg.mxu0
        %v1035 = vadd.f32 %v622, %v825
        %v1036 = vadd.f32 %v623, %v826
        %v1037 = vadd.f32 %v624, %v827
        %v1038 = vadd.f32 %v625, %v828
        %v1039 = vadd.f32 %v626, %v829
        %v1040 = vadd.f32 %v627, %v830
        %v1041 = vadd.f32 %v628, %v831
        %v1042 = vadd.f32 %v629, %v832
        %1043 = vst [vmem:[%s254] sm:$0xff] %v1013
        %1044 = vst [vmem:[%s254 + $0x8] sm:$0xff] %v1015
        %1045 = vst [vmem:[%s254 + $0x10] sm:$0xff] %v1019
        %1046 = vst [vmem:[%s254 + $0x18] sm:$0xff] %v1021
        %1047 = vst [vmem:[%s254 + $0x20] sm:$0xff] %v1025
        %1048 = vst [vmem:[%s254 + $0x28] sm:$0xff] %v1027
        %1049 = vst [vmem:[%s254 + $0x30] sm:$0xff] %v1031
        %1050 = vst [vmem:[%s254 + $0x38] sm:$0xff] %v1033
        %1051 = vst [vmem:[%s261] sm:$0xff] %v1035
        %1052 = vst [vmem:[%s261 + $0x8] sm:$0xff] %v1036
        %1053 = vst [vmem:[%s261 + $0x10] sm:$0xff] %v1037
        %1054 = vst [vmem:[%s261 + $0x18] sm:$0xff] %v1038
        %1055 = vst [vmem:[%s261 + $0x20] sm:$0xff] %v1039
        %1056 = vst [vmem:[%s261 + $0x28] sm:$0xff] %v1040
        %1057 = vst [vmem:[%s261 + $0x30] sm:$0xff] %v1041
        %1058 = vst [vmem:[%s261 + $0x38] sm:$0xff] %v1042
        %s1059 = sand.u32 %s122, 1
        %s1060 = scalar_lea.sflag [#allocation4], %s1059
        %s1061 = sand.u32 %s122, 1
        %s1062 = smul.addr %s1061, 64
        %s1063 = scalar_lea.vmem [#allocation5], %s1062
        %s1064 = sand.u32 %s150, 1
        %s1065 = scalar_lea.sflag [#allocation7], %s1064
        %s1066 = sand.u32 %s150, 1
        %s1067 = smul.addr %s1066, 64
        %s1068 = scalar_lea.vmem [#allocation6], %s1067
        // Predicated region
        $region37: #{tpu_custom_call.1} parent=31 // pred_check
          %p1069 = pneg %p132
        $region38: #{tpu_custom_call.1} parent=31 // pred_check_branch
          %1071 = sbr.rel (%p1069) target = $region40
        $region39: #{tpu_custom_call.1} parent=31 // pred_region
          %s1072 = smul.u32 2, %s30
          %s1074 = ssub.s32 1024, 1024
          %1075 = vsyncadd %s1060, %s1074
          %s1076 = smul.addr %s29, 8
          %s1077 = sadd.s32 %s1072, %s1076
          %s1078 = smul.addr %s1077, 128
          %s1079 = scalar_lea.hbm %s3, %s1078
          %s1080 = sshll.u32 %s1063, 4
          %s1081 = int_to_ptr.vmem [resolvable:$true] %s1080
          %1086 = dma.vmem_to_hbm [thread:$0]  %s1081, 1024, %s1079, %s1060, 256, 256, 16
        $region40: #{tpu_custom_call.1} parent=31 // pred_fallthru
          _
        // Predicated region
        $region41: #{tpu_custom_call.1} parent=31 // pred_check
          %p1087 = pneg %p160
        $region42: #{tpu_custom_call.1} parent=31 // pred_check_branch
          %1089 = sbr.rel (%p1087) target = $region44
        $region43: #{tpu_custom_call.1} parent=31 // pred_region
          %s1090 = smul.u32 2, %s30
          %s1092 = ssub.s32 1024, 1024
          %1093 = vsyncadd %s1065, %s1092
          %s1094 = smul.addr %s29, 8
          %s1095 = sadd.s32 %s1090, %s1094
          %s1096 = smul.addr %s1095, 128
          %s1097 = scalar_lea.hbm %s4, %s1096
          %s1098 = sshll.u32 %s1068, 4
          %s1099 = int_to_ptr.vmem [resolvable:$true] %s1098
          %1104 = dma.vmem_to_hbm [thread:$0]  %s1099, 1024, %s1097, %s1065, 256, 256, 16
        $region44: #{tpu_custom_call.1} parent=31 // pred_fallthru
          _
      $region32: #{tpu_custom_call.1} parent=5 // pred_fallthru
        _
      %p1105 = scmp.le.s32.totalorder 2, %s20
      // Predicated region
      $region45: #{tpu_custom_call.1} parent=5 // pred_check
        %p1106 = pneg %p1105
      $region46: #{tpu_custom_call.1} parent=5 // pred_check_branch
        %1108 = sbr.rel (%p1106) target = $region48
      $region47: #{tpu_custom_call.1} parent=5 // pred_region
        %s1109 = ssub.s32 %s20, 2
        // Predicated region
        $region49: #{tpu_custom_call.1} parent=47 // pred_check
          %p1110 = pneg %p138
        $region50: #{tpu_custom_call.1} parent=47 // pred_check_branch
          %1112 = sbr.rel (%p1110) target = $region52
        $region51: #{tpu_custom_call.1} parent=47 // pred_region
          %s1113 = sand.u32 %s123, 1
          %s1114 = scalar_lea.sflag [#allocation4], %s1113
          %s1115 = sand.u32 %s123, 1
          %s1116 = smul.addr %s1115, 64
          %s1117 = scalar_lea.vmem [#allocation5], %s1116
          %1118 = dma.done %s1114, 1024
        $region52: #{tpu_custom_call.1} parent=47 // pred_fallthru
          _
        // Predicated region
        $region53: #{tpu_custom_call.1} parent=47 // pred_check
          %p1119 = pneg %p166
        $region54: #{tpu_custom_call.1} parent=47 // pred_check_branch
          %1121 = sbr.rel (%p1119) target = $region56
        $region55: #{tpu_custom_call.1} parent=47 // pred_region
          %s1122 = sand.u32 %s151, 1
          %s1123 = scalar_lea.sflag [#allocation7], %s1122
          %s1124 = sand.u32 %s151, 1
          %s1125 = smul.addr %s1124, 64
          %s1126 = scalar_lea.vmem [#allocation6], %s1125
          %1127 = dma.done %s1123, 1024
        $region56: #{tpu_custom_call.1} parent=47 // pred_fallthru
          _
      $region48: #{tpu_custom_call.1} parent=5 // pred_fallthru
        _
    $region6: #{tpu_custom_call.1} parent=1 // loop_footer
      %s24 = sadd.s32 1, %s20
    $region7: #{tpu_custom_call.1} parent=1 // loop_footer_branch
      %19 = sbr.rel target = $region3
    $region8: #{tpu_custom_call.1} parent=1 // loop_exit
      _
    %1128 = vsyncpa [#allocation3], 1
    %s1129 = scalar_lea.sflag [#allocation3], 1
    %1130 = vsyncpa %s1129, 1
    %1131 = vsyncpa [#allocation4], 1
    %s1132 = scalar_lea.sflag [#allocation4], 1
    %1133 = vsyncpa %s1132, 1
    %1134 = vsyncpa [#allocation7], 1
    %s1135 = scalar_lea.sflag [#allocation7], 1
    %1136 = vsyncpa %s1135, 1

</llo_original>
